<compile_context>
chip_gen: v7x
topology: tpu7x:2x2x1
jax: 0.10.0
libtpu: 0.0.40
codegen_flags: <defaults>
</compile_context>

<pallas_src>
import math

import jax
import jax.numpy as jnp
from jax.experimental import pallas as pl
from jax.experimental.pallas import tpu as pltpu


def _round_up(v, m):
    return (v + m - 1) // m * m


def _lora_kernel(x_ref, wt_ref, b_ref, xa_ref, bt_ref, o_ref, acc_ref):
    """One (tm, tn) output tile, reduced over the K (in_features) grid axis."""
    k = pl.program_id(2)

    @pl.when(k == 0)
    def _():
        acc_ref[...] = jnp.zeros_like(acc_ref)

    # Base matmul: (tm, tk) @ (tk, tn) on the MXU, f32 accumulation.
    acc_ref[...] += jnp.dot(x_ref[...], wt_ref[...],
                            preferred_element_type=jnp.float32)

    # Finalize exactly once per output tile: bias + low-rank update.
    @pl.when(k == pl.num_programs(2) - 1)
    def _():
        lora = jnp.dot(xa_ref[...], bt_ref[...],          # (tm, r) @ (r, tn)
                       preferred_element_type=jnp.float32)
        o_ref[...] = (acc_ref[...] + b_ref[...] + lora).astype(o_ref.dtype)


def lora_forward(x, weight, bias, lora_A, lora_B, scaling,
                 *, tm=256, tn=512, tk=1024):
    """x: (N, in_f); weight: (out_f, in_f); bias: (out_f,);
       lora_A: (r, in_f); lora_B: (out_f, r)."""
    n, in_f = x.shape
    out_f = weight.shape[0]
    r = lora_A.shape[0]
    out_dtype = x.dtype

    # Hoist the tiny (N, r) LoRA-A projection out of the tiled kernel so it is
    # not recomputed for every out_f / K tile. (Dropout p=0.0 -> identity.)
    xa = jnp.dot(x, lora_A.T, preferred_element_type=jnp.float32)      # (n, r)
    # Fold `scaling` into B^T once (r x out_f): drops the per-tile VPU mul.
    bt = (lora_B.T * scaling).astype(jnp.float32)                      # (r, out_f)
    wt = weight.T                                                      # (in_f, out_f)
    b2d = bias.reshape(1, out_f).astype(jnp.float32)

    # Clamp tiles for small problems while keeping lane/sublane alignment.
    tm = min(tm, _round_up(n, 8))
    tn = min(tn, _round_up(out_f, 128))
    tk = min(tk, _round_up(in_f, 128))

    m_p = _round_up(n, tm)
    n_p = _round_up(out_f, tn)
    k_p = _round_up(in_f, tk)

    # Zero-pad to tile multiples (zeros along K are matmul-neutral; padded
    # output rows/cols are sliced off below).
    x_p = jnp.zeros((m_p, k_p), x.dtype).at[:n, :in_f].set(x)
    wt_p = jnp.zeros((k_p, n_p), wt.dtype).at[:in_f, :out_f].set(wt)
    b_p = jnp.zeros((1, n_p), jnp.float32).at[:, :out_f].set(b2d)
    xa_p = jnp.zeros((m_p, r), jnp.float32).at[:n, :].set(xa)
    bt_p = jnp.zeros((r, n_p), jnp.float32).at[:, :out_f].set(bt)

    grid = (m_p // tm, n_p // tn, k_p // tk)

    flops = 2 * n * in_f * out_f + 2 * n * r * out_f
    bytes_accessed = (x_p.size * x_p.dtype.itemsize
                      + wt_p.size * wt_p.dtype.itemsize
                      + b_p.size * 4 + xa_p.size * 4 + bt_p.size * 4
                      + m_p * n_p * jnp.dtype(out_dtype).itemsize)

    out_p = pl.pallas_call(
        _lora_kernel,
        out_shape=jax.ShapeDtypeStruct((m_p, n_p), out_dtype),
        grid_spec=pltpu.PrefetchScalarGridSpec(
            num_scalar_prefetch=0,
            grid=grid,
            in_specs=[
                pl.BlockSpec((tm, tk), lambda i, j, k: (i, k)),   # x tile
                pl.BlockSpec((tk, tn), lambda i, j, k: (k, j)),   # W^T tile (streamed)
                pl.BlockSpec((1, tn), lambda i, j, k: (0, j)),    # bias
                pl.BlockSpec((tm, r), lambda i, j, k: (i, 0)),    # xa = x @ A^T
                pl.BlockSpec((r, tn), lambda i, j, k: (0, j)),    # scaling * B^T
            ],
            out_specs=pl.BlockSpec((tm, tn), lambda i, j, k: (i, j)),
            scratch_shapes=[pltpu.VMEM((tm, tn), jnp.float32)],
        ),
        compiler_params=pltpu.CompilerParams(
            dimension_semantics=("parallel", "parallel", "arbitrary"),
            vmem_limit_bytes=48 * 1024 * 1024,
        ),
        cost_estimate=pl.CostEstimate(
            flops=flops, transcendentals=0, bytes_accessed=bytes_accessed),
    )(x_p, wt_p, b_p, xa_p, bt_p)

    return out_p[:n, :out_f]


if __name__ == "__main__":
    # Small shapes implied by the module: nn.Linear(in_f, out_f), rank r.
    N, IN_F, OUT_F, R, ALPHA = 8, 32, 32, 4, 16
    scaling = ALPHA / R  # 4.0

    key = jax.random.PRNGKey(0)
    k_x, k_w, k_b, k_a = jax.random.split(key, 4)

    # Deterministic parameter init mirroring the PyTorch module's __init__.
    w_bound = 1.0 / math.sqrt(IN_F)
    weight = jax.random.uniform(k_w, (OUT_F, IN_F), jnp.float32,
                                minval=-w_bound, maxval=w_bound)
    bias = jax.random.uniform(k_b, (OUT_F,), jnp.float32,
                              minval=-w_bound, maxval=w_bound)
    # lora_A: kaiming_uniform_(a=sqrt(5)) -> U(-1/sqrt(in_f), 1/sqrt(in_f))
    a_bound = 1.0 / math.sqrt(IN_F)
    lora_A = jax.random.uniform(k_a, (R, IN_F), jnp.float32,
                                minval=-a_bound, maxval=a_bound)
    # lora_B: zeros (as in the module).
    lora_B = jnp.zeros((OUT_F, R), jnp.float32)
    # Dropout p=0.0 -> Identity (default LoRAConfig), nothing to do.

    x = jax.random.normal(k_x, (N, IN_F), jnp.float32)

    out = lora_forward(x, weight, bias, lora_A, lora_B, scaling)
    out = jax.block_until_ready(out)

    # Pure-JAX reference check of the exact PyTorch semantics.
    ref = x @ weight.T + bias + (lora_B @ (lora_A @ x.T)).T * scaling
    assert out.shape == (N, OUT_F)
    assert jnp.allclose(out, ref, atol=1e-5, rtol=1e-5)

    print("KERNEL_OK")
</pallas_src>

<mosaic_0001>
module attributes {stable_mosaic.version = 11 : i64} {
  func.func @_lora_kernel(%arg0: i32, %arg1: i32, %arg2: i32, %arg3: memref<8x128xf32, #tpu.memory_space<vmem>>, %arg4: memref<128x128xf32, #tpu.memory_space<vmem>>, %arg5: memref<1x128xf32, #tpu.memory_space<vmem>>, %arg6: memref<8x4xf32, #tpu.memory_space<vmem>>, %arg7: memref<4x128xf32, #tpu.memory_space<vmem>>, %arg8: memref<8x128xf32, #tpu.memory_space<vmem>>, %arg9: memref<8x128xf32, #tpu.memory_space<vmem>>) attributes {dimension_semantics = [#tpu.dimension_semantics<parallel>, #tpu.dimension_semantics<parallel>, #tpu.dimension_semantics<arbitrary>], iteration_bounds = array<i64: 1, 1, 1>, scalar_prefetch = 0 : i64, scratch_operands = 1 : i64, tpu.core_type = #tpu.core_type<tc>, window_params = [{transform_indices = @transform_0, window_bounds = array<i64: 8, 128>}, {transform_indices = @transform_1, window_bounds = array<i64: 128, 128>}, {transform_indices = @transform_2, window_bounds = array<i64: 1, 128>}, {transform_indices = @transform_3, window_bounds = array<i64: 8, 4>}, {transform_indices = @transform_4, window_bounds = array<i64: 4, 128>}, {transform_indices = @transform_5, window_bounds = array<i64: 8, 128>}]} {
    %c0_i32 = arith.constant 0 : i32
    %0 = arith.cmpi eq, %arg2, %c0_i32 : i32
    %1 = arith.extui %0 : i1 to i32
    %c0_i32_0 = arith.constant 0 : i32
    %2 = arith.cmpi ne, %1, %c0_i32_0 : i32
    scf.if %2 {
      %cst_10 = arith.constant 0.000000e+00 : f32
      %12 = vector.broadcast %cst_10 : f32 to vector<8x128xf32>
      %c0_11 = arith.constant 0 : index
      %c0_12 = arith.constant 0 : index
      %13 = vector.load %arg9[%c0_11, %c0_12] : memref<8x128xf32, #tpu.memory_space<vmem>>, vector<8x128xf32>
      tpu.vector_store %arg9[%c0_11, %c0_12], %12 {strides = array<i32>} : memref<8x128xf32, #tpu.memory_space<vmem>>, vector<8x128xf32>,
    } else {
    }
    %c0 = arith.constant 0 : index
    %c0_1 = arith.constant 0 : index
    %3 = vector.load %arg9[%c0, %c0_1] : memref<8x128xf32, #tpu.memory_space<vmem>>, vector<8x128xf32>
    %c0_2 = arith.constant 0 : index
    %c0_3 = arith.constant 0 : index
    %4 = vector.load %arg3[%c0_2, %c0_3] : memref<8x128xf32, #tpu.memory_space<vmem>>, vector<8x128xf32>
    %c0_4 = arith.constant 0 : index
    %c0_5 = arith.constant 0 : index
    %5 = vector.load %arg4[%c0_4, %c0_5] : memref<128x128xf32, #tpu.memory_space<vmem>>, vector<128x128xf32>
    %cst = arith.constant dense<0.000000e+00> : vector<8x128xf32>
    %6 = tpu.matmul %4, %5, %cst {dimension_numbers = #tpu.dot_dimension_numbers<[1], [0], [0], [1], [0, 0, 1, 1], [], []>} : vector<8x128xf32>, vector<128x128xf32>, vector<8x128xf32> -> vector<8x128xf32>
    %7 = arith.addf %3, %6 : vector<8x128xf32>
    %c0_6 = arith.constant 0 : index
    %c0_7 = arith.constant 0 : index
    %8 = vector.load %arg9[%c0_6, %c0_7] : memref<8x128xf32, #tpu.memory_space<vmem>>, vector<8x128xf32>
    tpu.vector_store %arg9[%c0_6, %c0_7], %7 {strides = array<i32>} : memref<8x128xf32, #tpu.memory_space<vmem>>, vector<8x128xf32>,
    %c0_i32_8 = arith.constant 0 : i32
    %9 = arith.cmpi eq, %arg2, %c0_i32_8 : i32
    %10 = arith.extui %9 : i1 to i32
    %c0_i32_9 = arith.constant 0 : i32
    %11 = arith.cmpi ne, %10, %c0_i32_9 : i32
    scf.if %11 {
      %c0_10 = arith.constant 0 : index
      %c0_11 = arith.constant 0 : index
      %12 = vector.load %arg6[%c0_10, %c0_11] : memref<8x4xf32, #tpu.memory_space<vmem>>, vector<8x4xf32>
      %c0_12 = arith.constant 0 : index
      %c0_13 = arith.constant 0 : index
      %13 = vector.load %arg7[%c0_12, %c0_13] : memref<4x128xf32, #tpu.memory_space<vmem>>, vector<4x128xf32>
      %cst_14 = arith.constant dense<0.000000e+00> : vector<8x128xf32>
      %14 = tpu.matmul %12, %13, %cst_14 {dimension_numbers = #tpu.dot_dimension_numbers<[1], [0], [0], [1], [0, 0, 1, 1], [], []>} : vector<8x4xf32>, vector<4x128xf32>, vector<8x128xf32> -> vector<8x128xf32>
      %c0_15 = arith.constant 0 : index
      %c0_16 = arith.constant 0 : index
      %15 = vector.load %arg9[%c0_15, %c0_16] : memref<8x128xf32, #tpu.memory_space<vmem>>, vector<8x128xf32>
      %c0_17 = arith.constant 0 : index
      %c0_18 = arith.constant 0 : index
      %16 = vector.load %arg5[%c0_17, %c0_18] : memref<1x128xf32, #tpu.memory_space<vmem>>, vector<1x128xf32>
      %17 = vector.broadcast %16 : vector<1x128xf32> to vector<8x128xf32>
      %18 = arith.addf %15, %17 : vector<8x128xf32>
      %19 = arith.addf %18, %14 : vector<8x128xf32>
      %c0_19 = arith.constant 0 : index
      %c0_20 = arith.constant 0 : index
      %20 = vector.load %arg8[%c0_19, %c0_20] : memref<8x128xf32, #tpu.memory_space<vmem>>, vector<8x128xf32>
      tpu.vector_store %arg8[%c0_19, %c0_20], %19 {strides = array<i32>} : memref<8x128xf32, #tpu.memory_space<vmem>>, vector<8x128xf32>,
    } else {
    }
    return
  }
  func.func @transform_0(%arg0: i32, %arg1: i32, %arg2: i32) -> (i32, i32) {
    %c0_i32 = arith.constant 0 : i32
    return %arg0, %arg2 : i32, i32
  }
  func.func @transform_1(%arg0: i32, %arg1: i32, %arg2: i32) -> (i32, i32) {
    %c0_i32 = arith.constant 0 : i32
    return %arg2, %arg1 : i32, i32
  }
  func.func @transform_2(%arg0: i32, %arg1: i32, %arg2: i32) -> (i32, i32) {
    %c0_i32 = arith.constant 0 : i32
    %c0_i32_0 = arith.constant 0 : i32
    return %c0_i32, %arg1 : i32, i32
  }
  func.func @transform_3(%arg0: i32, %arg1: i32, %arg2: i32) -> (i32, i32) {
    %c0_i32 = arith.constant 0 : i32
    %c0_i32_0 = arith.constant 0 : i32
    return %arg0, %c0_i32 : i32, i32
  }
  func.func @transform_4(%arg0: i32, %arg1: i32, %arg2: i32) -> (i32, i32) {
    %c0_i32 = arith.constant 0 : i32
    %c0_i32_0 = arith.constant 0 : i32
    return %c0_i32, %arg1 : i32, i32
  }
  func.func @transform_5(%arg0: i32, %arg1: i32, %arg2: i32) -> (i32, i32) {
    %c0_i32 = arith.constant 0 : i32
    return %arg0, %arg1 : i32, i32
  }
}

</mosaic_0001>

<llo_original>
// kernel: tpu_custom_call.1
$region0: #{tpu_custom_call.1}
  #allocation0 [shape = 'u32[]', space=smem, size = 0x4, offset = 0x4, fixed_abs, tag = 'smem constant byte address 0x4 - core index']
  #allocation1 [shape = 'u32[144,128]{1,0:T(1,128)}', space=vmem, size = 0x12000, scoped, tag = 'internal scratch']
  #allocation2 [shape = 'f32[8,128]{1,0:T(8,128)}', space=vmem, size = 0x1000, scoped, tag = 'scratch operand']
  %s0 = inlined_call_operand.vmem [shape: f32[8,128], index: 0, kind: input, shape index: {}]
  %s1 = inlined_call_operand.hbm [shape: f32[128,128], index: 1, kind: input, shape index: {}]
  %s2 = inlined_call_operand.vmem [shape: f32[1,128], index: 2, kind: input, shape index: {}]
  %s3 = inlined_call_operand.vmem [shape: f32[8,4], index: 3, kind: input, shape index: {}]
  %s4 = inlined_call_operand.vmem [shape: f32[4,128], index: 4, kind: input, shape index: {}]
  %s5 = inlined_call_operand.hbm [shape: f32[8,128], index: 5, kind: output, shape index: {}]
  %s6 = sld [smem:[#allocation0]]
  $region42: #{tpu_custom_call.1} parent=0
    _
  %s8 = ssub.s32 1, %s6
  %s9 = scalar_select 0, %s8, %s6
  $region1: #{tpu_custom_call.1} parent=0
    #allocation3 [shape = 'u8[65536]{0}', space=vmem, size = 0x10000, scoped, tag = 'input window, operand 1, single buffered']
    #allocation4 [shape = 's32[1]{0}', space=sflag, size = 0x4, scoped, tag = 'scoped memory for tpu_custom_call.1']
    #allocation5 [shape = 's32[1]{0}', space=sflag, size = 0x4, scoped, tag = 'scoped memory for tpu_custom_call.1']
    #allocation6 [shape = 'u8[4096]{0}', space=vmem, size = 0x1000, scoped, tag = 'output window, operand 0, single buffered']
    %10 = vsyncpa [#allocation4], 0
    %11 = vsyncpa [#allocation5], 0
    // Predicated region
    $region2: #{tpu_custom_call.1} parent=1 // pred_check
      _
    $region3: #{tpu_custom_call.1} parent=1 // pred_check_branch
      %13 = sbr.rel (0) target = $region5
    $region4: #{tpu_custom_call.1} parent=1 // pred_region
      _
    $region5: #{tpu_custom_call.1} parent=1 // pred_fallthru
      _
    // Predicated region
    $region6: #{tpu_custom_call.1} parent=1 // pred_check
      _
    $region7: #{tpu_custom_call.1} parent=1 // pred_check_branch
      %15 = sbr.rel (0) target = $region9
    $region8: #{tpu_custom_call.1} parent=1 // pred_region
      %s17 = ssub.s32 2048, 2048
      %18 = vsyncadd [#allocation4], %s17
      %s19 = sshll.u32 [#allocation3], 4
      %s20 = int_to_ptr.vmem [resolvable:$true] %s19
      %25 = dma.hbm_to_vmem [thread:$0]  %s1, 2048, %s20, [#allocation4], 128, 128, 8
    $region9: #{tpu_custom_call.1} parent=1 // pred_fallthru
      _
    // Predicated region
    $region10: #{tpu_custom_call.1} parent=1 // pred_check
      _
    $region11: #{tpu_custom_call.1} parent=1 // pred_check_branch
      %27 = sbr.rel (0) target = $region13
    $region12: #{tpu_custom_call.1} parent=1 // pred_region
      _
    $region13: #{tpu_custom_call.1} parent=1 // pred_fallthru
      _
    // Predicated region
    $region14: #{tpu_custom_call.1} parent=1 // pred_check
      _
    $region15: #{tpu_custom_call.1} parent=1 // pred_check_branch
      %29 = sbr.rel (0) target = $region17
    $region16: #{tpu_custom_call.1} parent=1 // pred_region
      _
    $region17: #{tpu_custom_call.1} parent=1 // pred_fallthru
      _
    // Predicated region
    $region18: #{tpu_custom_call.1} parent=1 // pred_check
      _
    $region19: #{tpu_custom_call.1} parent=1 // pred_check_branch
      %31 = sbr.rel (0) target = $region21
    $region20: #{tpu_custom_call.1} parent=1 // pred_region
      _
    $region21: #{tpu_custom_call.1} parent=1 // pred_fallthru
      _
    // Predicated region
    $region22: #{tpu_custom_call.1} parent=1 // pred_check
      _
    $region23: #{tpu_custom_call.1} parent=1 // pred_check_branch
      %33 = sbr.rel (0) target = $region25
    $region24: #{tpu_custom_call.1} parent=1 // pred_region
      %34 = dma.done [#allocation4], 2048
    $region25: #{tpu_custom_call.1} parent=1 // pred_fallthru
      _
    %p35 = scmp.eq.s32.totalorder 0, 0
    // Predicated region
    $region26: #{tpu_custom_call.1} parent=1 // pred_check
      %p36 = pneg %p35
    $region27: #{tpu_custom_call.1} parent=1 // pred_check_branch
      %38 = sbr.rel (%p36) target = $region29
    $region28: #{tpu_custom_call.1} parent=1 // pred_region
      %39 = vst [vmem:[#allocation2] sm:$0xff] 0.0
    $region29: #{tpu_custom_call.1} parent=1 // pred_fallthru
      _
    %v40 = vld [vmem:[#allocation2] sm:$0xff]
    %v41 = vld [vmem:[%s0] sm:$0xff]
    %v42 = vld [vmem:[#allocation3] sm:$0xff]
    %v43 = vld [vmem:[#allocation3 + $0x8] sm:$0xff]
    %v44 = vld [vmem:[#allocation3 + $0x10] sm:$0xff]
    %v45 = vld [vmem:[#allocation3 + $0x18] sm:$0xff]
    %v46 = vld [vmem:[#allocation3 + $0x20] sm:$0xff]
    %v47 = vld [vmem:[#allocation3 + $0x28] sm:$0xff]
    %v48 = vld [vmem:[#allocation3 + $0x30] sm:$0xff]
    %v49 = vld [vmem:[#allocation3 + $0x38] sm:$0xff]
    %v50 = vld [vmem:[#allocation3 + $0x40] sm:$0xff]
    %v51 = vld [vmem:[#allocation3 + $0x48] sm:$0xff]
    %v52 = vld [vmem:[#allocation3 + $0x50] sm:$0xff]
    %v53 = vld [vmem:[#allocation3 + $0x58] sm:$0xff]
    %v54 = vld [vmem:[#allocation3 + $0x60] sm:$0xff]
    %v55 = vld [vmem:[#allocation3 + $0x68] sm:$0xff]
    %v56 = vld [vmem:[#allocation3 + $0x70] sm:$0xff]
    %v57 = vld [vmem:[#allocation3 + $0x78] sm:$0xff]
    %58 = vmatprep.subr.mxu0 0.0
    %59 = vmatpush1.msra.mxu0 %v42
    %60 = vmatprep.subr.mxu0 0.0
    %61 = vmatpush1.msra.mxu0 %v43
    %62 = vmatprep.subr.mxu0 0.0
    %63 = vmatpush1.msra.mxu0 %v44
    %64 = vmatprep.subr.mxu0 0.0
    %65 = vmatpush1.msra.mxu0 %v45
    %66 = vmatprep.subr.mxu0 0.0
    %67 = vmatpush1.msra.mxu0 %v46
    %68 = vmatprep.subr.mxu0 0.0
    %69 = vmatpush1.msra.mxu0 %v47
    %70 = vmatprep.subr.mxu0 0.0
    %71 = vmatpush1.msra.mxu0 %v48
    %72 = vmatprep.subr.mxu0 0.0
    %73 = vmatpush1.msra.mxu0 %v49
    %74 = vmatprep.subr.mxu0 0.0
    %75 = vmatpush1.msra.mxu0 %v50
    %76 = vmatprep.subr.mxu0 0.0
    %77 = vmatpush1.msra.mxu0 %v51
    %78 = vmatprep.subr.mxu0 0.0
    %79 = vmatpush1.msra.mxu0 %v52
    %80 = vmatprep.subr.mxu0 0.0
    %81 = vmatpush1.msra.mxu0 %v53
    %82 = vmatprep.subr.mxu0 0.0
    %83 = vmatpush1.msra.mxu0 %v54
    %84 = vmatprep.subr.mxu0 0.0
    %85 = vmatpush1.msra.mxu0 %v55
    %86 = vmatprep.subr.mxu0 0.0
    %87 = vmatpush1.msra.mxu0 %v56
    %88 = vmatprep.subr.mxu0 0.0
    %89 = vmatpush1.msra.mxu0 %v57
    %90 = vmatprep.subr.mxu0 0.0
    %91 = vmatpush1.msra.mxu0 0.0
    %92 = vmatprep.subr.mxu0 0.0
    %93 = vmatpush1.msra.mxu0 0.0
    %94 = vmatprep.subr.mxu0 0.0
    %95 = vmatpush1.msra.mxu0 0.0
    %96 = vmatprep.subr.mxu0 0.0
    %97 = vmatpush1.msra.mxu0 0.0
    %98 = vmatprep.subr.mxu0 0.0
    %99 = vmatpush1.msra.mxu0 0.0
    %100 = vmatprep.subr.mxu0 0.0
    %101 = vmatpush1.msra.mxu0 0.0
    %102 = vmatprep.subr.mxu0 0.0
    %103 = vmatpush1.msra.mxu0 0.0
    %104 = vmatprep.subr.mxu0 0.0
    %105 = vmatpush1.msra.mxu0 0.0
    %106 = vmatprep.subr.mxu0 0.0
    %107 = vmatpush1.msra.mxu0 0.0
    %108 = vmatprep.subr.mxu0 0.0
    %109 = vmatpush1.msra.mxu0 0.0
    %110 = vmatprep.subr.mxu0 0.0
    %111 = vmatpush1.msra.mxu0 0.0
    %112 = vmatprep.subr.mxu0 0.0
    %113 = vmatpush1.msra.mxu0 0.0
    %114 = vmatprep.subr.mxu0 0.0
    %115 = vmatpush1.msra.mxu0 0.0
    %116 = vmatprep.subr.mxu0 0.0
    %117 = vmatpush1.msra.mxu0 0.0
    %118 = vmatprep.subr.mxu0 0.0
    %119 = vmatpush1.msra.mxu0 0.0
    %120 = vmatprep.subr.mxu0 0.0
    %121 = vmatpush1.msra.mxu0 0.0
    %122 = vmatprep.mubr.f32.mxu0 0.0
    %123 = vmatmul.mubr.f32.gmra.mrb[0].mxu0 %v41
    %v124 = vpop.f32.mrb[0].mxu0
    %v125 = vadd.f32 0.0, %v124
    %v126 = vpop.f32.mrb[0].mxu0
    %127 = vdwg.mxu0
    %v128 = vadd.f32 %v40, %v125
    %129 = vst [vmem:[#allocation2] sm:$0xff] %v128
    // Predicated region
    $region30: #{tpu_custom_call.1} parent=1 // pred_check
      %p130 = pneg %p35
    $region31: #{tpu_custom_call.1} parent=1 // pred_check_branch
      %132 = sbr.rel (%p130) target = $region33
    $region32: #{tpu_custom_call.1} parent=1 // pred_region
      %v133 = vld [vmem:[%s3] sm:$0xff]
      %v134 = vld [vmem:[%s4] sm:$0xf]
      %vm135 = vcmask 31744
      %v137 = vsel %vm135, %v133, 0
      %vm139 = vcmask 1043456
      %v141 = vsel %vm139, %v134, 0
      %143 = vmatprep.subr.mxu0 0.0
      %144 = vmatpush1.msra.mxu0 %v141
      %145 = vmatprep.subr.mxu0 0.0
      %146 = vmatpush1.msra.mxu0 0.0
      %147 = vmatprep.subr.mxu0 0.0
      %148 = vmatpush1.msra.mxu0 0.0
      %149 = vmatprep.subr.mxu0 0.0
      %150 = vmatpush1.msra.mxu0 0.0
      %151 = vmatprep.subr.mxu0 0.0
      %152 = vmatpush1.msra.mxu0 0.0
      %153 = vmatprep.subr.mxu0 0.0
      %154 = vmatpush1.msra.mxu0 0.0
      %155 = vmatprep.subr.mxu0 0.0
      %156 = vmatpush1.msra.mxu0 0.0
      %157 = vmatprep.subr.mxu0 0.0
      %158 = vmatpush1.msra.mxu0 0.0
      %159 = vmatprep.subr.mxu0 0.0
      %160 = vmatpush1.msra.mxu0 0.0
      %161 = vmatprep.subr.mxu0 0.0
      %162 = vmatpush1.msra.mxu0 0.0
      %163 = vmatprep.subr.mxu0 0.0
      %164 = vmatpush1.msra.mxu0 0.0
      %165 = vmatprep.subr.mxu0 0.0
      %166 = vmatpush1.msra.mxu0 0.0
      %167 = vmatprep.subr.mxu0 0.0
      %168 = vmatpush1.msra.mxu0 0.0
      %169 = vmatprep.subr.mxu0 0.0
      %170 = vmatpush1.msra.mxu0 0.0
      %171 = vmatprep.subr.mxu0 0.0
      %172 = vmatpush1.msra.mxu0 0.0
      %173 = vmatprep.subr.mxu0 0.0
      %174 = vmatpush1.msra.mxu0 0.0
      %175 = vmatprep.subr.mxu0 0.0
      %176 = vmatpush1.msra.mxu0 0.0
      %177 = vmatprep.subr.mxu0 0.0
      %178 = vmatpush1.msra.mxu0 0.0
      %179 = vmatprep.subr.mxu0 0.0
      %180 = vmatpush1.msra.mxu0 0.0
      %181 = vmatprep.subr.mxu0 0.0
      %182 = vmatpush1.msra.mxu0 0.0
      %183 = vmatprep.subr.mxu0 0.0
      %184 = vmatpush1.msra.mxu0 0.0
      %185 = vmatprep.subr.mxu0 0.0
      %186 = vmatpush1.msra.mxu0 0.0
      %187 = vmatprep.subr.mxu0 0.0
      %188 = vmatpush1.msra.mxu0 0.0
      %189 = vmatprep.subr.mxu0 0.0
      %190 = vmatpush1.msra.mxu0 0.0
      %191 = vmatprep.subr.mxu0 0.0
      %192 = vmatpush1.msra.mxu0 0.0
      %193 = vmatprep.subr.mxu0 0.0
      %194 = vmatpush1.msra.mxu0 0.0
      %195 = vmatprep.subr.mxu0 0.0
      %196 = vmatpush1.msra.mxu0 0.0
      %197 = vmatprep.subr.mxu0 0.0
      %198 = vmatpush1.msra.mxu0 0.0
      %199 = vmatprep.subr.mxu0 0.0
      %200 = vmatpush1.msra.mxu0 0.0
      %201 = vmatprep.subr.mxu0 0.0
      %202 = vmatpush1.msra.mxu0 0.0
      %203 = vmatprep.subr.mxu0 0.0
      %204 = vmatpush1.msra.mxu0 0.0
      %205 = vmatprep.subr.mxu0 0.0
      %206 = vmatpush1.msra.mxu0 0.0
      %207 = vmatprep.mubr.f32.mxu0 0.0
      %208 = vmatmul.mubr.f32.gmra.mrb[0].mxu0 %v137
      %v209 = vpop.f32.mrb[0].mxu0
      %v210 = vadd.f32 0.0, %v209
      %v211 = vpop.f32.mrb[0].mxu0
      %212 = vdwg.mxu0
      %v213 = vld [vmem:[#allocation2] sm:$0xff]
      %v214 = vld [vmem:[%s2] sm:$0x1]
      %v216 = vlaneseq
      %v217 = vshrl.u32 %v216, 7
      %v218 = vsub.s32 0, %v217
      %v219 = vrot.slane %v214, %v218
      %v221 = vadd.f32 %v213, %v219
      %v222 = vadd.f32 %v221, %v210
      %223 = vst [vmem:[#allocation6] sm:$0xff] %v222
    $region33: #{tpu_custom_call.1} parent=1 // pred_fallthru
      _
    // Predicated region
    $region34: #{tpu_custom_call.1} parent=1 // pred_check
      _
    $region35: #{tpu_custom_call.1} parent=1 // pred_check_branch
      %225 = sbr.rel (0) target = $region37
    $region36: #{tpu_custom_call.1} parent=1 // pred_region
      %s227 = ssub.s32 128, 128
      %228 = vsyncadd [#allocation5], %s227
      %s230 = sshll.u32 [#allocation6], 4
      %s231 = int_to_ptr.vmem [resolvable:$true] %s230
      %233 = dma.vmem_to_hbm [thread:$0]  %s231, 128, %s5, [#allocation5]
    $region37: #{tpu_custom_call.1} parent=1 // pred_fallthru
      _
    // Predicated region
    $region38: #{tpu_custom_call.1} parent=1 // pred_check
      _
    $region39: #{tpu_custom_call.1} parent=1 // pred_check_branch
      %235 = sbr.rel (0) target = $region41
    $region40: #{tpu_custom_call.1} parent=1 // pred_region
      %236 = dma.done [#allocation5], 128
    $region41: #{tpu_custom_call.1} parent=1 // pred_fallthru
      _
    %237 = vsyncpa [#allocation4], 1
    %238 = vsyncpa [#allocation5], 1

</llo_original>
